<compile_context>
chip_gen: v7x
topology: tpu7x:2x2x1
jax: 0.10.0
libtpu: 0.0.40
codegen_flags: <defaults>
</compile_context>

<pallas_src>
import jax
import jax.numpy as jnp
from jax.experimental import pallas as pl
from jax.experimental.pallas import tpu as pltpu


HIDDEN_SIZES = [512, 256, 128, 64, 32]   # Net hidden layer widths (spec)


def _net_pairs_kernel(x_ref, wp_ref, sp_ref, out_ref):
    """Fused Net MLP + per-trajectory reductions for stacked trajectory pairs.

    x_ref   : (M, D) bf16, M = 2*P*T. Rows [0, P*T) are the P `traj_i`
              trajectories (T rows each), rows [P*T, 2*P*T) the P `traj_j`.
    wp_ref  : (2*D + 960, 256) bf16 packed hidden weights:
                rows [0, D)      = W0[:, 0:256]
                rows [D, 2D)     = W0[:, 256:512]
                next 512 rows    = W1 (512, 256)
                next 256 rows    = W2 (256, 128)   (lanes 0:128)
                next 128 rows    = W3 (128, 64)    (lanes 0:64)
                next  64 rows    = W4 (64, 32)     (lanes 0:32)
    sp_ref  : (8, 512) f32 packed small params:
                row 0 = b0(512), row 1 = b1(256), row 2 = b2(128),
                row 3 = b3(64),  row 4 = b4(32),
                row 5 = w5(32) (final Linear(32->1) weight as a row),
                row 6 = b5(1)
    out_ref : (2*P, 2) f32. Row g = [sum(r_g), sum(|r_g|)] for trajectory
              group g (groups 0..P-1 = traj_i, groups P..2P-1 = traj_j).
    """
    f32 = jnp.float32
    bf16 = jnp.bfloat16
    D = x_ref.shape[1]
    h = x_ref[...]                                               # (M, D) bf16

    # ---- layer 0: D -> 512, kept as two 256-lane halves (no concat needed).
    o = 0
    z0a = jnp.dot(h, wp_ref[o:o + D, :], preferred_element_type=f32)
    o += D
    z0b = jnp.dot(h, wp_ref[o:o + D, :], preferred_element_type=f32)
    o += D
    h0a = jnp.maximum(z0a + sp_ref[0:1, 0:256], 0.0).astype(bf16)
    h0b = jnp.maximum(z0b + sp_ref[0:1, 256:512], 0.0).astype(bf16)

    # ---- layer 1: 512 -> 256 (two K halves, f32 accumulate).
    z1 = (jnp.dot(h0a, wp_ref[o:o + 256, :], preferred_element_type=f32) +
          jnp.dot(h0b, wp_ref[o + 256:o + 512, :], preferred_element_type=f32))
    o += 512
    h1 = jnp.maximum(z1 + sp_ref[1:2, 0:256], 0.0).astype(bf16)

    # ---- layer 2: 256 -> 128
    z2 = jnp.dot(h1, wp_ref[o:o + 256, 0:128], preferred_element_type=f32)
    o += 256
    h2 = jnp.maximum(z2 + sp_ref[2:3, 0:128], 0.0).astype(bf16)

    # ---- layer 3: 128 -> 64
    z3 = jnp.dot(h2, wp_ref[o:o + 128, 0:64], preferred_element_type=f32)
    o += 128
    h3 = jnp.maximum(z3 + sp_ref[3:4, 0:64], 0.0).astype(bf16)

    # ---- layer 4: 64 -> 32
    z4 = jnp.dot(h3, wp_ref[o:o + 64, 0:32], preferred_element_type=f32)
    h4 = jnp.maximum(z4 + sp_ref[4:5, 0:32], 0.0)                # keep f32

    # ---- final layer (32 -> 1): VPU multiply + lane reduce (no masked N=1
    #      MXU op).  The trailing ReLU was popped in the PyTorch module.
    w5 = sp_ref[5:6, 0:32]
    b5 = sp_ref[6:7, 0:1]
    r = jnp.sum(h4 * w5, axis=-1, keepdims=True) + b5            # (M, 1) f32

    # ---- per-trajectory reductions: groups of T consecutive rows.
    r2 = jnp.concatenate([r, jnp.abs(r)], axis=1)                # (M, 2)
    n_groups = out_ref.shape[0]                                  # 2 * P (static)
    t_len = x_ref.shape[0] // n_groups                           # T (static)
    rows = [jnp.sum(r2[g * t_len:(g + 1) * t_len, :], axis=0, keepdims=True)
            for g in range(n_groups)]
    out_ref[...] = jnp.concatenate(rows, axis=0)                 # single store


def pack_params(params):
    """One-time packing of Net params into the two kernel buffers.

    params: [(w, b), ...] f32 with w of shape (fan_in, fan_out) for layers
            input_dim->512->256->128->64->32->1 (i.e. PyTorch weight.T).
    Returns (w_packed bf16 (2*D+960, 256), small f32 (8, 512)).
    Call ONCE (e.g. after each optimizer step), never inside the forward.
    """
    (w0, b0), (w1, b1), (w2, b2), (w3, b3), (w4, b4), (w5, b5) = [
        (jnp.asarray(w, jnp.float32), jnp.asarray(b, jnp.float32))
        for (w, b) in params]

    lane = 256
    blocks = [w0[:, 0:256], w0[:, 256:512], w1, w2, w3, w4]
    padded = [jnp.pad(b_, ((0, 0), (0, lane - b_.shape[1]))) for b_ in blocks]
    w_packed = jnp.concatenate(padded, axis=0).astype(jnp.bfloat16)

    small = jnp.zeros((8, 512), jnp.float32)
    small = small.at[0, :512].set(b0)
    small = small.at[1, :256].set(b1)
    small = small.at[2, :128].set(b2)
    small = small.at[3, :64].set(b3)
    small = small.at[4, :32].set(b4)
    small = small.at[5, :32].set(w5.reshape(-1))    # (32,1) column -> row
    small = small.at[6, 0].set(b5.reshape(-1)[0])
    return w_packed, small


@jax.jit
def net_forward(traj_i, traj_j, w_packed, small):
    """Pallas equivalent of Net.forward.

    traj_i / traj_j: (T, input_dim) for one pair (matches the PyTorch module),
    or (P, T, input_dim) for P pairs scored in ONE fused kernel call.
    Returns (logits, sum_abs): ((2,), scalar) unbatched, ((P, 2), (P,)) batched.
    """
    batched = traj_i.ndim == 3
    ti = traj_i if batched else traj_i[None]
    tj = traj_j if batched else traj_j[None]
    P = ti.shape[0]
    D = ti.shape[-1]
    # Stack every trajectory into the M dimension: one weight DMA, one launch.
    x = jnp.concatenate([ti.reshape(-1, D), tj.reshape(-1, D)],
                        axis=0).astype(jnp.bfloat16)             # (2*P*T, D)

    vmem = pl.BlockSpec(memory_space=pltpu.MemorySpace.VMEM)
    out = pl.pallas_call(
        _net_pairs_kernel,
        out_shape=jax.ShapeDtypeStruct((2 * P, 2), jnp.float32),
        in_specs=[vmem, vmem, vmem],
        out_specs=vmem,
    )(x, w_packed, small)

    cum_i, abs_i = out[:P, 0], out[:P, 1]
    cum_j, abs_j = out[P:, 0], out[P:, 1]
    logits = jnp.stack([cum_i, cum_j], axis=-1)                  # (P, 2)
    abs_sum = abs_i + abs_j                                      # (P,)
    if batched:
        return logits, abs_sum
    return logits[0], abs_sum[0]


def net_forward_ref(traj_i, traj_j, params):
    """Pure-JAX f32 reference (mirrors the PyTorch module exactly)."""
    def cum_return(traj):
        h = traj.reshape(-1, traj.shape[-1])
        for k, (w, b) in enumerate(params):
            h = h @ w + b
            if k < len(params) - 1:
                h = jnp.maximum(h, 0.0)
        return jnp.sum(h), jnp.sum(jnp.abs(h))
    ci, ai = cum_return(traj_i)
    cj, aj = cum_return(traj_j)
    return jnp.stack([ci, cj]), ai + aj


def init_params(key, input_dim):
    """PyTorch nn.Linear default init: U(-1/sqrt(fan_in), 1/sqrt(fan_in))."""
    dims = [input_dim] + HIDDEN_SIZES + [1]
    params = []
    for fan_in, fan_out in zip(dims, dims[1:]):
        key, kw, kb = jax.random.split(key, 3)
        bound = 1.0 / jnp.sqrt(jnp.float32(fan_in))
        w = jax.random.uniform(kw, (fan_in, fan_out), jnp.float32, -bound, bound)
        b = jax.random.uniform(kb, (fan_out,), jnp.float32, -bound, bound)
        params.append((w, b))
    return params


if __name__ == "__main__":
    input_dim = 32   # Net(input_dim=32)
    T = 8            # timesteps per trajectory

    key = jax.random.PRNGKey(0)
    kp, ki, kj = jax.random.split(key, 3)

    params = init_params(kp, input_dim)
    w_packed, small = pack_params(params)          # one-time, off the hot path

    traj_i = jax.random.normal(ki, (T, input_dim), jnp.float32)
    traj_j = jax.random.normal(kj, (T, input_dim), jnp.float32)

    # ---- single pair (matches Net.forward) ----
    logits, abs_sum = net_forward(traj_i, traj_j, w_packed, small)
    logits = jax.block_until_ready(logits)
    abs_sum = jax.block_until_ready(abs_sum)
    assert logits.shape == (2,) and abs_sum.shape == ()

    # f32-reference tolerance check (bf16 weight/activation path).
    ref_logits, ref_abs = net_forward_ref(traj_i, traj_j, params)
    assert bool(jnp.allclose(logits, ref_logits, rtol=1e-1, atol=1e-1))
    assert bool(jnp.allclose(abs_sum, ref_abs, rtol=1e-1, atol=1e-1))

    # ---- batched pairs: P pairs scored in one fused kernel call ----
    P = 4
    kbi, kbj = jax.random.split(jax.random.PRNGKey(1))
    bi = jax.random.normal(kbi, (P, T, input_dim), jnp.float32)
    bj = jax.random.normal(kbj, (P, T, input_dim), jnp.float32)
    blogits, babs = net_forward(bi, bj, w_packed, small)
    blogits = jax.block_until_ready(blogits)
    babs = jax.block_until_ready(babs)
    assert blogits.shape == (P, 2) and babs.shape == (P,)
    l0, a0 = net_forward_ref(bi[0], bj[0], params)
    assert bool(jnp.allclose(blogits[0], l0, rtol=1e-1, atol=1e-1))
    assert bool(jnp.allclose(babs[0], a0, rtol=1e-1, atol=1e-1))

    print("KERNEL_OK")
</pallas_src>

<mosaic_0001>
module attributes {stable_mosaic.version = 11 : i64} {
  func.func @_net_pairs_kernel(%arg0: memref<16x32xbf16, #tpu.memory_space<vmem>>, %arg1: memref<1024x256xbf16, #tpu.memory_space<vmem>>, %arg2: memref<8x512xf32, #tpu.memory_space<vmem>>, %arg3: memref<2x2xf32, #tpu.memory_space<vmem>>) attributes {dimension_semantics = [], scalar_prefetch = 0 : i64, scratch_operands = 0 : i64, tpu.core_type = #tpu.core_type<tc>} {
    %c0 = arith.constant 0 : index
    %c0_0 = arith.constant 0 : index
    %0 = vector.load %arg0[%c0, %c0_0] : memref<16x32xbf16, #tpu.memory_space<vmem>>, vector<16x32xbf16>
    %c0_1 = arith.constant 0 : index
    %c0_2 = arith.constant 0 : index
    %1 = vector.load %arg1[%c0_1, %c0_2] : memref<1024x256xbf16, #tpu.memory_space<vmem>>, vector<32x256xbf16>
    %cst = arith.constant dense<0.000000e+00> : vector<16x256xf32>
    %2 = tpu.matmul %0, %1, %cst {dimension_numbers = #tpu.dot_dimension_numbers<[1], [0], [0], [1], [0, 0, 1, 1], [], []>} : vector<16x32xbf16>, vector<32x256xbf16>, vector<16x256xf32> -> vector<16x256xf32>
    %c32 = arith.constant 32 : index
    %c0_3 = arith.constant 0 : index
    %3 = vector.load %arg1[%c32, %c0_3] : memref<1024x256xbf16, #tpu.memory_space<vmem>>, vector<32x256xbf16>
    %cst_4 = arith.constant dense<0.000000e+00> : vector<16x256xf32>
    %4 = tpu.matmul %0, %3, %cst_4 {dimension_numbers = #tpu.dot_dimension_numbers<[1], [0], [0], [1], [0, 0, 1, 1], [], []>} : vector<16x32xbf16>, vector<32x256xbf16>, vector<16x256xf32> -> vector<16x256xf32>
    %c0_5 = arith.constant 0 : index
    %c0_6 = arith.constant 0 : index
    %5 = vector.load %arg2[%c0_5, %c0_6] : memref<8x512xf32, #tpu.memory_space<vmem>>, vector<1x256xf32>
    %6 = vector.broadcast %5 : vector<1x256xf32> to vector<16x256xf32>
    %7 = arith.addf %2, %6 : vector<16x256xf32>
    %cst_7 = arith.constant 0.000000e+00 : f32
    %8 = vector.broadcast %cst_7 : f32 to vector<16x256xf32>
    %9 = arith.maximumf %7, %8 : vector<16x256xf32>
    %10 = arith.truncf %9 : vector<16x256xf32> to vector<16x256xbf16>
    %c0_8 = arith.constant 0 : index
    %c256 = arith.constant 256 : index
    %11 = vector.load %arg2[%c0_8, %c256] : memref<8x512xf32, #tpu.memory_space<vmem>>, vector<1x256xf32>
    %12 = vector.broadcast %11 : vector<1x256xf32> to vector<16x256xf32>
    %13 = arith.addf %4, %12 : vector<16x256xf32>
    %cst_9 = arith.constant 0.000000e+00 : f32
    %14 = vector.broadcast %cst_9 : f32 to vector<16x256xf32>
    %15 = arith.maximumf %13, %14 : vector<16x256xf32>
    %16 = arith.truncf %15 : vector<16x256xf32> to vector<16x256xbf16>
    %c64 = arith.constant 64 : index
    %c0_10 = arith.constant 0 : index
    %17 = vector.load %arg1[%c64, %c0_10] : memref<1024x256xbf16, #tpu.memory_space<vmem>>, vector<256x256xbf16>
    %cst_11 = arith.constant dense<0.000000e+00> : vector<16x256xf32>
    %18 = tpu.matmul %10, %17, %cst_11 {dimension_numbers = #tpu.dot_dimension_numbers<[1], [0], [0], [1], [0, 0, 1, 1], [], []>} : vector<16x256xbf16>, vector<256x256xbf16>, vector<16x256xf32> -> vector<16x256xf32>
    %c320 = arith.constant 320 : index
    %c0_12 = arith.constant 0 : index
    %19 = vector.load %arg1[%c320, %c0_12] : memref<1024x256xbf16, #tpu.memory_space<vmem>>, vector<256x256xbf16>
    %cst_13 = arith.constant dense<0.000000e+00> : vector<16x256xf32>
    %20 = tpu.matmul %16, %19, %cst_13 {dimension_numbers = #tpu.dot_dimension_numbers<[1], [0], [0], [1], [0, 0, 1, 1], [], []>} : vector<16x256xbf16>, vector<256x256xbf16>, vector<16x256xf32> -> vector<16x256xf32>
    %21 = arith.addf %18, %20 : vector<16x256xf32>
    %c1 = arith.constant 1 : index
    %c0_14 = arith.constant 0 : index
    %22 = vector.load %arg2[%c1, %c0_14] : memref<8x512xf32, #tpu.memory_space<vmem>>, vector<1x256xf32>
    %23 = vector.broadcast %22 : vector<1x256xf32> to vector<16x256xf32>
    %24 = arith.addf %21, %23 : vector<16x256xf32>
    %cst_15 = arith.constant 0.000000e+00 : f32
    %25 = vector.broadcast %cst_15 : f32 to vector<16x256xf32>
    %26 = arith.maximumf %24, %25 : vector<16x256xf32>
    %27 = arith.truncf %26 : vector<16x256xf32> to vector<16x256xbf16>
    %c576 = arith.constant 576 : index
    %c0_16 = arith.constant 0 : index
    %28 = vector.load %arg1[%c576, %c0_16] : memref<1024x256xbf16, #tpu.memory_space<vmem>>, vector<256x128xbf16>
    %cst_17 = arith.constant dense<0.000000e+00> : vector<16x128xf32>
    %29 = tpu.matmul %27, %28, %cst_17 {dimension_numbers = #tpu.dot_dimension_numbers<[1], [0], [0], [1], [0, 0, 1, 1], [], []>} : vector<16x256xbf16>, vector<256x128xbf16>, vector<16x128xf32> -> vector<16x128xf32>
    %c2 = arith.constant 2 : index
    %c0_18 = arith.constant 0 : index
    %30 = vector.load %arg2[%c2, %c0_18] : memref<8x512xf32, #tpu.memory_space<vmem>>, vector<1x128xf32>
    %31 = vector.broadcast %30 : vector<1x128xf32> to vector<16x128xf32>
    %32 = arith.addf %29, %31 : vector<16x128xf32>
    %cst_19 = arith.constant 0.000000e+00 : f32
    %33 = vector.broadcast %cst_19 : f32 to vector<16x128xf32>
    %34 = arith.maximumf %32, %33 : vector<16x128xf32>
    %35 = arith.truncf %34 : vector<16x128xf32> to vector<16x128xbf16>
    %c832 = arith.constant 832 : index
    %c0_20 = arith.constant 0 : index
    %36 = vector.load %arg1[%c832, %c0_20] : memref<1024x256xbf16, #tpu.memory_space<vmem>>, vector<128x64xbf16>
    %cst_21 = arith.constant dense<0.000000e+00> : vector<16x64xf32>
    %37 = tpu.matmul %35, %36, %cst_21 {dimension_numbers = #tpu.dot_dimension_numbers<[1], [0], [0], [1], [0, 0, 1, 1], [], []>} : vector<16x128xbf16>, vector<128x64xbf16>, vector<16x64xf32> -> vector<16x64xf32>
    %c3 = arith.constant 3 : index
    %c0_22 = arith.constant 0 : index
    %38 = vector.load %arg2[%c3, %c0_22] : memref<8x512xf32, #tpu.memory_space<vmem>>, vector<1x64xf32>
    %39 = vector.broadcast %38 : vector<1x64xf32> to vector<16x64xf32>
    %40 = arith.addf %37, %39 : vector<16x64xf32>
    %cst_23 = arith.constant 0.000000e+00 : f32
    %41 = vector.broadcast %cst_23 : f32 to vector<16x64xf32>
    %42 = arith.maximumf %40, %41 : vector<16x64xf32>
    %43 = arith.truncf %42 : vector<16x64xf32> to vector<16x64xbf16>
    %c960 = arith.constant 960 : index
    %c0_24 = arith.constant 0 : index
    %44 = vector.load %arg1[%c960, %c0_24] : memref<1024x256xbf16, #tpu.memory_space<vmem>>, vector<64x32xbf16>
    %cst_25 = arith.constant dense<0.000000e+00> : vector<16x32xf32>
    %45 = tpu.matmul %43, %44, %cst_25 {dimension_numbers = #tpu.dot_dimension_numbers<[1], [0], [0], [1], [0, 0, 1, 1], [], []>} : vector<16x64xbf16>, vector<64x32xbf16>, vector<16x32xf32> -> vector<16x32xf32>
    %c4 = arith.constant 4 : index
    %c0_26 = arith.constant 0 : index
    %46 = vector.load %arg2[%c4, %c0_26] : memref<8x512xf32, #tpu.memory_space<vmem>>, vector<1x32xf32>
    %47 = vector.broadcast %46 : vector<1x32xf32> to vector<16x32xf32>
    %48 = arith.addf %45, %47 : vector<16x32xf32>
    %cst_27 = arith.constant 0.000000e+00 : f32
    %49 = vector.broadcast %cst_27 : f32 to vector<16x32xf32>
    %50 = arith.maximumf %48, %49 : vector<16x32xf32>
    %c5 = arith.constant 5 : index
    %c0_28 = arith.constant 0 : index
    %51 = vector.load %arg2[%c5, %c0_28] : memref<8x512xf32, #tpu.memory_space<vmem>>, vector<1x32xf32>
    %c6 = arith.constant 6 : index
    %c0_29 = arith.constant 0 : index
    %52 = vector.load %arg2[%c6, %c0_29] : memref<8x512xf32, #tpu.memory_space<vmem>>, vector<1x1xf32>
    %53 = vector.broadcast %51 : vector<1x32xf32> to vector<16x32xf32>
    %54 = arith.mulf %50, %53 : vector<16x32xf32>
    %cst_30 = arith.constant dense<0.000000e+00> : vector<16xf32>
    %55 = vector.multi_reduction <add>, %54, %cst_30 [1] : vector<16x32xf32> to vector<16xf32>
    %56 = vector.shape_cast %55 : vector<16xf32> to vector<16x1xf32>
    %57 = vector.broadcast %52 : vector<1x1xf32> to vector<16x1xf32>
    %58 = arith.addf %56, %57 : vector<16x1xf32>
    %59 = math.absf %58 : vector<16x1xf32>
    %60 = tpu.concatenate %58, %59 in 1 : vector<16x1xf32>, vector<16x1xf32> -> vector<16x2xf32>
    %61 = vector.extract_strided_slice %60 {offsets = [0, 0], sizes = [8, 2], strides = [1, 1]} : vector<16x2xf32> to vector<8x2xf32>
    %cst_31 = arith.constant dense<0.000000e+00> : vector<2xf32>
    %62 = vector.multi_reduction <add>, %61, %cst_31 [0] : vector<8x2xf32> to vector<2xf32>
    %63 = vector.shape_cast %62 : vector<2xf32> to vector<1x2xf32>
    %64 = vector.extract_strided_slice %60 {offsets = [8, 0], sizes = [8, 2], strides = [1, 1]} : vector<16x2xf32> to vector<8x2xf32>
    %cst_32 = arith.constant dense<0.000000e+00> : vector<2xf32>
    %65 = vector.multi_reduction <add>, %64, %cst_32 [0] : vector<8x2xf32> to vector<2xf32>
    %66 = vector.shape_cast %65 : vector<2xf32> to vector<1x2xf32>
    %67 = tpu.concatenate %63, %66 in 0 : vector<1x2xf32>, vector<1x2xf32> -> vector<2x2xf32>
    %c0_33 = arith.constant 0 : index
    %c0_34 = arith.constant 0 : index
    %68 = vector.load %arg3[%c0_33, %c0_34] : memref<2x2xf32, #tpu.memory_space<vmem>>, vector<2x2xf32>
    tpu.vector_store %arg3[%c0_33, %c0_34], %67 {strides = array<i32>} : memref<2x2xf32, #tpu.memory_space<vmem>>, vector<2x2xf32>,
    return
  }
}

</mosaic_0001>

<llo_original>
// kernel: net_forward.1
$region0: #{net_forward.1}
  #allocation0 [shape = 'u32[]', space=smem, size = 0x4, offset = 0x4, fixed_abs, tag = 'smem constant byte address 0x4 - core index']
  #allocation1 [shape = 'u32[144,128]{1,0:T(1,128)}', space=vmem, size = 0x12000, scoped, tag = 'internal scratch']
  %s0 = inlined_call_operand.vmem [shape: bf16[16,32], index: 0, kind: input, shape index: {}]
  %s1 = inlined_call_operand.hbm [shape: bf16[1024,256], index: 1, kind: input, shape index: {}]
  %s2 = inlined_call_operand.vmem [shape: f32[8,512], index: 2, kind: input, shape index: {}]
  %s3 = inlined_call_operand.vmem [shape: f32[2,2], index: 3, kind: output, shape index: {}]
  %s4 = sld [smem:[#allocation0]]
  $region26: #{net_forward.1} parent=0
    _
  %s6 = ssub.s32 1, %s4
  %s7 = scalar_select 0, %s6, %s4
  $region1: #{net_forward.1} parent=0
    #allocation2 [shape = 'u8[524288]{0}', space=vmem, size = 0x80000, scoped, tag = 'input window, operand 1, single buffered']
    #allocation3 [shape = 's32[1]{0}', space=sflag, size = 0x4, scoped, tag = 'scoped memory for net_forward.1']
    %8 = vsyncpa [#allocation3], 0
    // Predicated region
    $region2: #{net_forward.1} parent=1 // pred_check
      _
    $region3: #{net_forward.1} parent=1 // pred_check_branch
      %10 = sbr.rel (0) target = $region5
    $region4: #{net_forward.1} parent=1 // pred_region
      _
    $region5: #{net_forward.1} parent=1 // pred_fallthru
      _
    // Predicated region
    $region6: #{net_forward.1} parent=1 // pred_check
      _
    $region7: #{net_forward.1} parent=1 // pred_check_branch
      %12 = sbr.rel (0) target = $region9
    $region8: #{net_forward.1} parent=1 // pred_region
      %s14 = ssub.s32 16384, 16384
      %15 = vsyncadd [#allocation3], %s14
      %s16 = sshll.u32 [#allocation2], 4
      %s17 = int_to_ptr.vmem [resolvable:$true] %s16
      %22 = dma.hbm_to_vmem [thread:$0]  %s1, 16384, %s17, [#allocation3], 128, 128, 8
    $region9: #{net_forward.1} parent=1 // pred_fallthru
      _
    // Predicated region
    $region10: #{net_forward.1} parent=1 // pred_check
      _
    $region11: #{net_forward.1} parent=1 // pred_check_branch
      %24 = sbr.rel (0) target = $region13
    $region12: #{net_forward.1} parent=1 // pred_region
      _
    $region13: #{net_forward.1} parent=1 // pred_fallthru
      _
    // Predicated region
    $region14: #{net_forward.1} parent=1 // pred_check
      _
    $region15: #{net_forward.1} parent=1 // pred_check_branch
      %26 = sbr.rel (0) target = $region17
    $region16: #{net_forward.1} parent=1 // pred_region
      %27 = dma.done [#allocation3], 16384
    $region17: #{net_forward.1} parent=1 // pred_fallthru
      _
    %v29 = vld [vmem:[%s0] sm:$0xf]
    %v30 = vld [vmem:[%s0 + $0x4] sm:$0xf]
    %v31 = vld [vmem:[#allocation2] sm:$0xff]
    %v32 = vld [vmem:[#allocation2 + $0x8] sm:$0xff]
    %v33 = vld [vmem:[#allocation2 + $0x10] sm:$0xff]
    %v34 = vld [vmem:[#allocation2 + $0x18] sm:$0xff]
    %v35 = vld [vmem:[#allocation2 + $0x20] sm:$0xff]
    %v36 = vld [vmem:[#allocation2 + $0x28] sm:$0xff]
    %v37 = vld [vmem:[#allocation2 + $0x30] sm:$0xff]
    %v38 = vld [vmem:[#allocation2 + $0x38] sm:$0xff]
    %v39 = vld [vmem:[%s2] ss:$8 sm:$0x3]
    %v41 = vlaneseq
    %v42 = vshrl.u32 %v41, 7
    %v43 = vsub.s32 0, %v42
    %v44 = vrot.slane %v39, %v43
    %v45 = vlaneseq
    %v46 = vshrl.u32 %v45, 7
    %v47 = vsub.s32 1, %v46
    %v48 = vrot.slane %v39, %v47
    %v53 = vunpack.c.l.b16 %v29
    %v54 = vunpack.c.l.b16 %v30
    %v55 = vpack.c.b16 %v54, %v53
    %v60 = vunpack.c.l.b16 %v31
    %v61 = vunpack.c.h.b16 %v31
    %v62 = vunpack.c.l.b16 %v32
    %v63 = vunpack.c.h.b16 %v32
    %v64 = vunpack.c.l.b16 %v33
    %v65 = vunpack.c.h.b16 %v33
    %v66 = vunpack.c.l.b16 %v34
    %v67 = vunpack.c.h.b16 %v34
    %v68 = vpack.c.b16 %v62, %v60
    %v69 = vpack.c.b16 %v63, %v61
    %v70 = vpack.c.b16 %v66, %v64
    %v71 = vpack.c.b16 %v67, %v65
    %vm76 = vcmask 261120
    %v78 = vsel %vm76, %v55, 0
    %80 = vmatprep.subr.bf16.mxu0 %v69
    %81 = vmatpush1.bf16.msra.mxu0 %v68
    %82 = vmatprep.subr.bf16.mxu0 %v71
    %83 = vmatpush1.bf16.msra.mxu0 %v70
    %84 = vmatprep.subr.bf16.mxu0 0
    %85 = vmatpush1.bf16.msra.mxu0 0
    %86 = vmatprep.subr.bf16.mxu0 0
    %87 = vmatpush1.bf16.msra.mxu0 0
    %88 = vmatprep.subr.bf16.mxu0 0
    %89 = vmatpush1.bf16.msra.mxu0 0
    %90 = vmatprep.subr.bf16.mxu0 0
    %91 = vmatpush1.bf16.msra.mxu0 0
    %92 = vmatprep.subr.bf16.mxu0 0
    %93 = vmatpush1.bf16.msra.mxu0 0
    %94 = vmatprep.subr.bf16.mxu0 0
    %95 = vmatpush1.bf16.msra.mxu0 0
    %96 = vmatprep.subr.bf16.mxu0 0
    %97 = vmatpush1.bf16.msra.mxu0 0
    %98 = vmatprep.subr.bf16.mxu0 0
    %99 = vmatpush1.bf16.msra.mxu0 0
    %100 = vmatprep.subr.bf16.mxu0 0
    %101 = vmatpush1.bf16.msra.mxu0 0
    %102 = vmatprep.subr.bf16.mxu0 0
    %103 = vmatpush1.bf16.msra.mxu0 0
    %104 = vmatprep.subr.bf16.mxu0 0
    %105 = vmatpush1.bf16.msra.mxu0 0
    %106 = vmatprep.subr.bf16.mxu0 0
    %107 = vmatpush1.bf16.msra.mxu0 0
    %108 = vmatprep.subr.bf16.mxu0 0
    %109 = vmatpush1.bf16.msra.mxu0 0
    %110 = vmatprep.subr.bf16.mxu0 0
    %111 = vmatpush1.bf16.msra.mxu0 0
    %112 = vmatprep.mubr.bf16.mxu0 0
    %113 = vmatmul.mubr.bf16.gmra.mrb[0].mxu0 %v78
    %v114 = vpop.f32.mrb[0].mxu0
    %v115 = vadd.f32 %v44, %v114
    %v116 = vpop.f32.mrb[0].mxu0
    %v117 = vadd.f32 %v48, %v116
    %v118 = vpop.f32.mrb[0].mxu0
    %v119 = vadd.f32 %v44, %v118
    %v120 = vpop.f32.mrb[0].mxu0
    %v121 = vadd.f32 %v48, %v120
    %122 = vdwg.mxu0
    %v123 = vmax.f32 %v115, 0.0
    %v124 = vmax.f32 %v117, 0.0
    %v125 = vmax.f32 %v119, 0.0
    %v126 = vmax.f32 %v121, 0.0
    %v127 = vpack.c.bf16 %v125, %v123
    %v128 = vpack.c.bf16 %v126, %v124
    %s129 = scalar_lea.vmem %s2, 16
    %v130 = vld [vmem:[%s129] ss:$8 sm:$0x3]
    %v132 = vlaneseq
    %v133 = vshrl.u32 %v132, 7
    %v134 = vsub.s32 0, %v133
    %v135 = vrot.slane %v130, %v134
    %v136 = vlaneseq
    %v137 = vshrl.u32 %v136, 7
    %v138 = vsub.s32 1, %v137
    %v139 = vrot.slane %v130, %v138
    %v146 = vunpack.c.l.b16 %v35
    %v147 = vunpack.c.h.b16 %v35
    %v148 = vunpack.c.l.b16 %v36
    %v149 = vunpack.c.h.b16 %v36
    %v150 = vunpack.c.l.b16 %v37
    %v151 = vunpack.c.h.b16 %v37
    %v152 = vunpack.c.l.b16 %v38
    %v153 = vunpack.c.h.b16 %v38
    %v154 = vpack.c.b16 %v148, %v146
    %v155 = vpack.c.b16 %v149, %v147
    %v156 = vpack.c.b16 %v152, %v150
    %v157 = vpack.c.b16 %v153, %v151
    %162 = vmatprep.subr.bf16.mxu0 %v155
    %163 = vmatpush1.bf16.msra.mxu0 %v154
    %164 = vmatprep.subr.bf16.mxu0 %v157
    %165 = vmatpush1.bf16.msra.mxu0 %v156
    %166 = vmatprep.subr.bf16.mxu0 0
    %167 = vmatpush1.bf16.msra.mxu0 0
    %168 = vmatprep.subr.bf16.mxu0 0
    %169 = vmatpush1.bf16.msra.mxu0 0
    %170 = vmatprep.subr.bf16.mxu0 0
    %171 = vmatpush1.bf16.msra.mxu0 0
    %172 = vmatprep.subr.bf16.mxu0 0
    %173 = vmatpush1.bf16.msra.mxu0 0
    %174 = vmatprep.subr.bf16.mxu0 0
    %175 = vmatpush1.bf16.msra.mxu0 0
    %176 = vmatprep.subr.bf16.mxu0 0
    %177 = vmatpush1.bf16.msra.mxu0 0
    %178 = vmatprep.subr.bf16.mxu0 0
    %179 = vmatpush1.bf16.msra.mxu0 0
    %180 = vmatprep.subr.bf16.mxu0 0
    %181 = vmatpush1.bf16.msra.mxu0 0
    %182 = vmatprep.subr.bf16.mxu0 0
    %183 = vmatpush1.bf16.msra.mxu0 0
    %184 = vmatprep.subr.bf16.mxu0 0
    %185 = vmatpush1.bf16.msra.mxu0 0
    %186 = vmatprep.subr.bf16.mxu0 0
    %187 = vmatpush1.bf16.msra.mxu0 0
    %188 = vmatprep.subr.bf16.mxu0 0
    %189 = vmatpush1.bf16.msra.mxu0 0
    %190 = vmatprep.subr.bf16.mxu0 0
    %191 = vmatpush1.bf16.msra.mxu0 0
    %192 = vmatprep.subr.bf16.mxu0 0
    %193 = vmatpush1.bf16.msra.mxu0 0
    %194 = vmatprep.mubr.bf16.mxu0 0
    %195 = vmatmul.mubr.bf16.gmra.mrb[0].mxu0 %v78
    %v196 = vpop.f32.mrb[0].mxu0
    %v197 = vadd.f32 %v135, %v196
    %v198 = vpop.f32.mrb[0].mxu0
    %v199 = vadd.f32 %v139, %v198
    %v200 = vpop.f32.mrb[0].mxu0
    %v201 = vadd.f32 %v135, %v200
    %v202 = vpop.f32.mrb[0].mxu0
    %v203 = vadd.f32 %v139, %v202
    %204 = vdwg.mxu0
    %v205 = vmax.f32 %v197, 0.0
    %v206 = vmax.f32 %v199, 0.0
    %v207 = vmax.f32 %v201, 0.0
    %v208 = vmax.f32 %v203, 0.0
    %v209 = vpack.c.bf16 %v207, %v205
    %v210 = vpack.c.bf16 %v208, %v206
    %v211 = vld [vmem:[#allocation2 + $0x40] sm:$0xff]
    %v212 = vld [vmem:[#allocation2 + $0x48] sm:$0xff]
    %v213 = vld [vmem:[#allocation2 + $0x50] sm:$0xff]
    %v214 = vld [vmem:[#allocation2 + $0x58] sm:$0xff]
    %v215 = vld [vmem:[#allocation2 + $0x60] sm:$0xff]
    %v216 = vld [vmem:[#allocation2 + $0x68] sm:$0xff]
    %v217 = vld [vmem:[#allocation2 + $0x70] sm:$0xff]
    %v218 = vld [vmem:[#allocation2 + $0x78] sm:$0xff]
    %v219 = vld [vmem:[#allocation2 + $0x80] sm:$0xff]
    %v220 = vld [vmem:[#allocation2 + $0x88] sm:$0xff]
    %v221 = vld [vmem:[#allocation2 + $0x90] sm:$0xff]
    %v222 = vld [vmem:[#allocation2 + $0x98] sm:$0xff]
    %v223 = vld [vmem:[#allocation2 + $0xa0] sm:$0xff]
    %v224 = vld [vmem:[#allocation2 + $0xa8] sm:$0xff]
    %v225 = vld [vmem:[#allocation2 + $0xb0] sm:$0xff]
    %v226 = vld [vmem:[#allocation2 + $0xb8] sm:$0xff]
    %v227 = vld [vmem:[#allocation2 + $0xc0] sm:$0xff]
    %v228 = vld [vmem:[#allocation2 + $0xc8] sm:$0xff]
    %v229 = vld [vmem:[#allocation2 + $0xd0] sm:$0xff]
    %v230 = vld [vmem:[#allocation2 + $0xd8] sm:$0xff]
    %v231 = vld [vmem:[#allocation2 + $0xe0] sm:$0xff]
    %v232 = vld [vmem:[#allocation2 + $0xe8] sm:$0xff]
    %v233 = vld [vmem:[#allocation2 + $0xf0] sm:$0xff]
    %v234 = vld [vmem:[#allocation2 + $0xf8] sm:$0xff]
    %v235 = vld [vmem:[#allocation2 + $0x100] sm:$0xff]
    %v236 = vld [vmem:[#allocation2 + $0x108] sm:$0xff]
    %v237 = vld [vmem:[#allocation2 + $0x110] sm:$0xff]
    %v238 = vld [vmem:[#allocation2 + $0x118] sm:$0xff]
    %v239 = vld [vmem:[#allocation2 + $0x120] sm:$0xff]
    %v240 = vld [vmem:[#allocation2 + $0x128] sm:$0xff]
    %v241 = vld [vmem:[#allocation2 + $0x130] sm:$0xff]
    %v242 = vld [vmem:[#allocation2 + $0x138] sm:$0xff]
    %v243 = vld [vmem:[#allocation2 + $0x140] sm:$0xff]
    %v244 = vld [vmem:[#allocation2 + $0x148] sm:$0xff]
    %v245 = vld [vmem:[#allocation2 + $0x150] sm:$0xff]
    %v246 = vld [vmem:[#allocation2 + $0x158] sm:$0xff]
    %v247 = vld [vmem:[#allocation2 + $0x160] sm:$0xff]
    %v248 = vld [vmem:[#allocation2 + $0x168] sm:$0xff]
    %v249 = vld [vmem:[#allocation2 + $0x170] sm:$0xff]
    %v250 = vld [vmem:[#allocation2 + $0x178] sm:$0xff]
    %v251 = vld [vmem:[#allocation2 + $0x180] sm:$0xff]
    %v252 = vld [vmem:[#allocation2 + $0x188] sm:$0xff]
    %v253 = vld [vmem:[#allocation2 + $0x190] sm:$0xff]
    %v254 = vld [vmem:[#allocation2 + $0x198] sm:$0xff]
    %v255 = vld [vmem:[#allocation2 + $0x1a0] sm:$0xff]
    %v256 = vld [vmem:[#allocation2 + $0x1a8] sm:$0xff]
    %v257 = vld [vmem:[#allocation2 + $0x1b0] sm:$0xff]
    %v258 = vld [vmem:[#allocation2 + $0x1b8] sm:$0xff]
    %v259 = vld [vmem:[#allocation2 + $0x1c0] sm:$0xff]
    %v260 = vld [vmem:[#allocation2 + $0x1c8] sm:$0xff]
    %v261 = vld [vmem:[#allocation2 + $0x1d0] sm:$0xff]
    %v262 = vld [vmem:[#allocation2 + $0x1d8] sm:$0xff]
    %v263 = vld [vmem:[#allocation2 + $0x1e0] sm:$0xff]
    %v264 = vld [vmem:[#allocation2 + $0x1e8] sm:$0xff]
    %v265 = vld [vmem:[#allocation2 + $0x1f0] sm:$0xff]
    %v266 = vld [vmem:[#allocation2 + $0x1f8] sm:$0xff]
    %v267 = vld [vmem:[#allocation2 + $0x200] sm:$0xff]
    %v268 = vld [vmem:[#allocation2 + $0x208] sm:$0xff]
    %v269 = vld [vmem:[#allocation2 + $0x210] sm:$0xff]
    %v270 = vld [vmem:[#allocation2 + $0x218] sm:$0xff]
    %v271 = vld [vmem:[#allocation2 + $0x220] sm:$0xff]
    %v272 = vld [vmem:[#allocation2 + $0x228] sm:$0xff]
    %v273 = vld [vmem:[#allocation2 + $0x230] sm:$0xff]
    %v274 = vld [vmem:[#allocation2 + $0x238] sm:$0xff]
    %v307 = vunpack.c.l.b16 %v243
    %v308 = vunpack.c.h.b16 %v243
    %v309 = vunpack.c.l.b16 %v244
    %v310 = vunpack.c.h.b16 %v244
    %v311 = vunpack.c.l.b16 %v245
    %v312 = vunpack.c.h.b16 %v245
    %v313 = vunpack.c.l.b16 %v246
    %v314 = vunpack.c.h.b16 %v246
    %v315 = vunpack.c.l.b16 %v247
    %v316 = vunpack.c.h.b16 %v247
    %v317 = vunpack.c.l.b16 %v248
    %v318 = vunpack.c.h.b16 %v248
    %v319 = vunpack.c.l.b16 %v249
    %v320 = vunpack.c.h.b16 %v249
    %v321 = vunpack.c.l.b16 %v250
    %v322 = vunpack.c.h.b16 %v250
    %v323 = vunpack.c.l.b16 %v251
    %v324 = vunpack.c.h.b16 %v251
    %v325 = vunpack.c.l.b16 %v252
    %v326 = vunpack.c.h.b16 %v252
    %v327 = vunpack.c.l.b16 %v253
    %v328 = vunpack.c.h.b16 %v253
    %v329 = vunpack.c.l.b16 %v254
    %v330 = vunpack.c.h.b16 %v254
    %v331 = vunpack.c.l.b16 %v255
    %v332 = vunpack.c.h.b16 %v255
    %v333 = vunpack.c.l.b16 %v256
    %v334 = vunpack.c.h.b16 %v256
    %v335 = vunpack.c.l.b16 %v257
    %v336 = vunpack.c.h.b16 %v257
    %v337 = vunpack.c.l.b16 %v258
    %v338 = vunpack.c.h.b16 %v258
    %v339 = vunpack.c.l.b16 %v259
    %v340 = vunpack.c.h.b16 %v259
    %v341 = vunpack.c.l.b16 %v260
    %v342 = vunpack.c.h.b16 %v260
    %v343 = vunpack.c.l.b16 %v261
    %v344 = vunpack.c.h.b16 %v261
    %v345 = vunpack.c.l.b16 %v262
    %v346 = vunpack.c.h.b16 %v262
    %v347 = vunpack.c.l.b16 %v263
    %v348 = vunpack.c.h.b16 %v263
    %v349 = vunpack.c.l.b16 %v264
    %v350 = vunpack.c.h.b16 %v264
    %v351 = vunpack.c.l.b16 %v265
    %v352 = vunpack.c.h.b16 %v265
    %v353 = vunpack.c.l.b16 %v266
    %v354 = vunpack.c.h.b16 %v266
    %v355 = vunpack.c.l.b16 %v267
    %v356 = vunpack.c.h.b16 %v267
    %v357 = vunpack.c.l.b16 %v268
    %v358 = vunpack.c.h.b16 %v268
    %v359 = vunpack.c.l.b16 %v269
    %v360 = vunpack.c.h.b16 %v269
    %v361 = vunpack.c.l.b16 %v270
    %v362 = vunpack.c.h.b16 %v270
    %v363 = vunpack.c.l.b16 %v271
    %v364 = vunpack.c.h.b16 %v271
    %v365 = vunpack.c.l.b16 %v272
    %v366 = vunpack.c.h.b16 %v272
    %v367 = vunpack.c.l.b16 %v273
    %v368 = vunpack.c.h.b16 %v273
    %v369 = vunpack.c.l.b16 %v274
    %v370 = vunpack.c.h.b16 %v274
    %v371 = vpack.c.b16 %v309, %v307
    %v372 = vpack.c.b16 %v310, %v308
    %v373 = vpack.c.b16 %v313, %v311
    %v374 = vpack.c.b16 %v314, %v312
    %v375 = vpack.c.b16 %v317, %v315
    %v376 = vpack.c.b16 %v318, %v316
    %v377 = vpack.c.b16 %v321, %v319
    %v378 = vpack.c.b16 %v322, %v320
    %v379 = vpack.c.b16 %v325, %v323
    %v380 = vpack.c.b16 %v326, %v324
    %v381 = vpack.c.b16 %v329, %v327
    %v382 = vpack.c.b16 %v330, %v328
    %v383 = vpack.c.b16 %v333, %v331
    %v384 = vpack.c.b16 %v334, %v332
    %v385 = vpack.c.b16 %v337, %v335
    %v386 = vpack.c.b16 %v338, %v336
    %v387 = vpack.c.b16 %v341, %v339
    %v388 = vpack.c.b16 %v342, %v340
    %v389 = vpack.c.b16 %v345, %v343
    %v390 = vpack.c.b16 %v346, %v344
    %v391 = vpack.c.b16 %v349, %v347
    %v392 = vpack.c.b16 %v350, %v348
    %v393 = vpack.c.b16 %v353, %v351
    %v394 = vpack.c.b16 %v354, %v352
    %v395 = vpack.c.b16 %v357, %v355
    %v396 = vpack.c.b16 %v358, %v356
    %v397 = vpack.c.b16 %v361, %v359
    %v398 = vpack.c.b16 %v362, %v360
    %v399 = vpack.c.b16 %v365, %v363
    %v400 = vpack.c.b16 %v366, %v364
    %v401 = vpack.c.b16 %v369, %v367
    %v402 = vpack.c.b16 %v370, %v368
    %435 = vmatprep.subr.bf16.mxu0 %v372
    %436 = vmatpush1.bf16.msra.mxu0 %v371
    %437 = vmatprep.subr.bf16.mxu0 %v374
    %438 = vmatpush1.bf16.msra.mxu0 %v373
    %439 = vmatprep.subr.bf16.mxu0 %v376
    %440 = vmatpush1.bf16.msra.mxu0 %v375
    %441 = vmatprep.subr.bf16.mxu0 %v378
    %442 = vmatpush1.bf16.msra.mxu0 %v377
    %443 = vmatprep.subr.bf16.mxu0 %v380
    %444 = vmatpush1.bf16.msra.mxu0 %v379
    %445 = vmatprep.subr.bf16.mxu0 %v382
    %446 = vmatpush1.bf16.msra.mxu0 %v381
    %447 = vmatprep.subr.bf16.mxu0 %v384
    %448 = vmatpush1.bf16.msra.mxu0 %v383
    %449 = vmatprep.subr.bf16.mxu0 %v386
    %450 = vmatpush1.bf16.msra.mxu0 %v385
    %451 = vmatprep.subr.bf16.mxu0 %v388
    %452 = vmatpush1.bf16.msra.mxu0 %v387
    %453 = vmatprep.subr.bf16.mxu0 %v390
    %454 = vmatpush1.bf16.msra.mxu0 %v389
    %455 = vmatprep.subr.bf16.mxu0 %v392
    %456 = vmatpush1.bf16.msra.mxu0 %v391
    %457 = vmatprep.subr.bf16.mxu0 %v394
    %458 = vmatpush1.bf16.msra.mxu0 %v393
    %459 = vmatprep.subr.bf16.mxu0 %v396
    %460 = vmatpush1.bf16.msra.mxu0 %v395
    %461 = vmatprep.subr.bf16.mxu0 %v398
    %462 = vmatpush1.bf16.msra.mxu0 %v397
    %463 = vmatprep.subr.bf16.mxu0 %v400
    %464 = vmatpush1.bf16.msra.mxu0 %v399
    %465 = vmatprep.subr.bf16.mxu0 %v402
    %466 = vmatpush1.bf16.msra.mxu0 %v401
    %467 = vmatprep.mubr.bf16.mxu0 %v210
    %468 = vmatmul.mubr.bf16.gmra.mrb[0].mxu0 %v209
    %v469 = vpop.f32.mrb[0].mxu0
    %v470 = vadd.f32 0.0, %v469
    %v471 = vpop.f32.mrb[0].mxu0
    %v472 = vadd.f32 0.0, %v471
    %v473 = vpop.f32.mrb[0].mxu0
    %v474 = vadd.f32 0.0, %v473
    %v475 = vpop.f32.mrb[0].mxu0
    %v476 = vadd.f32 0.0, %v475
    %477 = vdwg.mxu0
    %v510 = vunpack.c.l.b16 %v211
    %v511 = vunpack.c.h.b16 %v211
    %v512 = vunpack.c.l.b16 %v212
    %v513 = vunpack.c.h.b16 %v212
    %v514 = vunpack.c.l.b16 %v213
    %v515 = vunpack.c.h.b16 %v213
    %v516 = vunpack.c.l.b16 %v214
    %v517 = vunpack.c.h.b16 %v214
    %v518 = vunpack.c.l.b16 %v215
    %v519 = vunpack.c.h.b16 %v215
    %v520 = vunpack.c.l.b16 %v216
    %v521 = vunpack.c.h.b16 %v216
    %v522 = vunpack.c.l.b16 %v217
    %v523 = vunpack.c.h.b16 %v217
    %v524 = vunpack.c.l.b16 %v218
    %v525 = vunpack.c.h.b16 %v218
    %v526 = vunpack.c.l.b16 %v219
    %v527 = vunpack.c.h.b16 %v219
    %v528 = vunpack.c.l.b16 %v220
    %v529 = vunpack.c.h.b16 %v220
    %v530 = vunpack.c.l.b16 %v221
    %v531 = vunpack.c.h.b16 %v221
    %v532 = vunpack.c.l.b16 %v222
    %v533 = vunpack.c.h.b16 %v222
    %v534 = vunpack.c.l.b16 %v223
    %v535 = vunpack.c.h.b16 %v223
    %v536 = vunpack.c.l.b16 %v224
    %v537 = vunpack.c.h.b16 %v224
    %v538 = vunpack.c.l.b16 %v225
    %v539 = vunpack.c.h.b16 %v225
    %v540 = vunpack.c.l.b16 %v226
    %v541 = vunpack.c.h.b16 %v226
    %v542 = vunpack.c.l.b16 %v227
    %v543 = vunpack.c.h.b16 %v227
    %v544 = vunpack.c.l.b16 %v228
    %v545 = vunpack.c.h.b16 %v228
    %v546 = vunpack.c.l.b16 %v229
    %v547 = vunpack.c.h.b16 %v229
    %v548 = vunpack.c.l.b16 %v230
    %v549 = vunpack.c.h.b16 %v230
    %v550 = vunpack.c.l.b16 %v231
    %v551 = vunpack.c.h.b16 %v231
    %v552 = vunpack.c.l.b16 %v232
    %v553 = vunpack.c.h.b16 %v232
    %v554 = vunpack.c.l.b16 %v233
    %v555 = vunpack.c.h.b16 %v233
    %v556 = vunpack.c.l.b16 %v234
    %v557 = vunpack.c.h.b16 %v234
    %v558 = vunpack.c.l.b16 %v235
    %v559 = vunpack.c.h.b16 %v235
    %v560 = vunpack.c.l.b16 %v236
    %v561 = vunpack.c.h.b16 %v236
    %v562 = vunpack.c.l.b16 %v237
    %v563 = vunpack.c.h.b16 %v237
    %v564 = vunpack.c.l.b16 %v238
    %v565 = vunpack.c.h.b16 %v238
    %v566 = vunpack.c.l.b16 %v239
    %v567 = vunpack.c.h.b16 %v239
    %v568 = vunpack.c.l.b16 %v240
    %v569 = vunpack.c.h.b16 %v240
    %v570 = vunpack.c.l.b16 %v241
    %v571 = vunpack.c.h.b16 %v241
    %v572 = vunpack.c.l.b16 %v242
    %v573 = vunpack.c.h.b16 %v242
    %v574 = vpack.c.b16 %v512, %v510
    %v575 = vpack.c.b16 %v513, %v511
    %v576 = vpack.c.b16 %v516, %v514
    %v577 = vpack.c.b16 %v517, %v515
    %v578 = vpack.c.b16 %v520, %v518
    %v579 = vpack.c.b16 %v521, %v519
    %v580 = vpack.c.b16 %v524, %v522
    %v581 = vpack.c.b16 %v525, %v523
    %v582 = vpack.c.b16 %v528, %v526
    %v583 = vpack.c.b16 %v529, %v527
    %v584 = vpack.c.b16 %v532, %v530
    %v585 = vpack.c.b16 %v533, %v531
    %v586 = vpack.c.b16 %v536, %v534
    %v587 = vpack.c.b16 %v537, %v535
    %v588 = vpack.c.b16 %v540, %v538
    %v589 = vpack.c.b16 %v541, %v539
    %v590 = vpack.c.b16 %v544, %v542
    %v591 = vpack.c.b16 %v545, %v543
    %v592 = vpack.c.b16 %v548, %v546
    %v593 = vpack.c.b16 %v549, %v547
    %v594 = vpack.c.b16 %v552, %v550
    %v595 = vpack.c.b16 %v553, %v551
    %v596 = vpack.c.b16 %v556, %v554
    %v597 = vpack.c.b16 %v557, %v555
    %v598 = vpack.c.b16 %v560, %v558
    %v599 = vpack.c.b16 %v561, %v559
    %v600 = vpack.c.b16 %v564, %v562
    %v601 = vpack.c.b16 %v565, %v563
    %v602 = vpack.c.b16 %v568, %v566
    %v603 = vpack.c.b16 %v569, %v567
    %v604 = vpack.c.b16 %v572, %v570
    %v605 = vpack.c.b16 %v573, %v571
    %638 = vmatprep.subr.bf16.mxu0 %v575
    %639 = vmatpush1.bf16.msra.mxu0 %v574
    %640 = vmatprep.subr.bf16.mxu0 %v577
    %641 = vmatpush1.bf16.msra.mxu0 %v576
    %642 = vmatprep.subr.bf16.mxu0 %v579
    %643 = vmatpush1.bf16.msra.mxu0 %v578
    %644 = vmatprep.subr.bf16.mxu0 %v581
    %645 = vmatpush1.bf16.msra.mxu0 %v580
    %646 = vmatprep.subr.bf16.mxu0 %v583
    %647 = vmatpush1.bf16.msra.mxu0 %v582
    %648 = vmatprep.subr.bf16.mxu0 %v585
    %649 = vmatpush1.bf16.msra.mxu0 %v584
    %650 = vmatprep.subr.bf16.mxu0 %v587
    %651 = vmatpush1.bf16.msra.mxu0 %v586
    %652 = vmatprep.subr.bf16.mxu0 %v589
    %653 = vmatpush1.bf16.msra.mxu0 %v588
    %654 = vmatprep.subr.bf16.mxu0 %v591
    %655 = vmatpush1.bf16.msra.mxu0 %v590
    %656 = vmatprep.subr.bf16.mxu0 %v593
    %657 = vmatpush1.bf16.msra.mxu0 %v592
    %658 = vmatprep.subr.bf16.mxu0 %v595
    %659 = vmatpush1.bf16.msra.mxu0 %v594
    %660 = vmatprep.subr.bf16.mxu0 %v597
    %661 = vmatpush1.bf16.msra.mxu0 %v596
    %662 = vmatprep.subr.bf16.mxu0 %v599
    %663 = vmatpush1.bf16.msra.mxu0 %v598
    %664 = vmatprep.subr.bf16.mxu0 %v601
    %665 = vmatpush1.bf16.msra.mxu0 %v600
    %666 = vmatprep.subr.bf16.mxu0 %v603
    %667 = vmatpush1.bf16.msra.mxu0 %v602
    %668 = vmatprep.subr.bf16.mxu0 %v605
    %669 = vmatpush1.bf16.msra.mxu0 %v604
    %670 = vmatprep.mubr.bf16.mxu0 %v128
    %671 = vmatmul.mubr.bf16.gmra.mrb[0].mxu0 %v127
    %v672 = vpop.f32.mrb[0].mxu0
    %v673 = vadd.f32 %v470, %v672
    %v674 = vpop.f32.mrb[0].mxu0
    %v675 = vadd.f32 %v472, %v674
    %v676 = vpop.f32.mrb[0].mxu0
    %v677 = vadd.f32 %v474, %v676
    %v678 = vpop.f32.mrb[0].mxu0
    %v679 = vadd.f32 %v476, %v678
    %680 = vdwg.mxu0
    %s681 = scalar_lea.vmem %s2, 1
    %v682 = vld [vmem:[%s681] ss:$8 sm:$0x3]
    %v684 = vlaneseq
    %v685 = vshrl.u32 %v684, 7
    %v686 = vsub.s32 0, %v685
    %v687 = vrot.slane %v682, %v686
    %v688 = vlaneseq
    %v689 = vshrl.u32 %v688, 7
    %v690 = vsub.s32 1, %v689
    %v691 = vrot.slane %v682, %v690
    %v694 = vadd.f32 %v673, %v687
    %v695 = vadd.f32 %v675, %v691
    %v696 = vadd.f32 %v677, %v687
    %v697 = vadd.f32 %v679, %v691
    %v698 = vmax.f32 %v694, 0.0
    %v699 = vmax.f32 %v695, 0.0
    %v700 = vmax.f32 %v696, 0.0
    %v701 = vmax.f32 %v697, 0.0
    %v702 = vpack.c.bf16 %v700, %v698
    %v703 = vpack.c.bf16 %v701, %v699
    %v704 = vld [vmem:[#allocation2 + $0x240] sm:$0xf]
    %v705 = vld [vmem:[#allocation2 + $0x248] sm:$0xf]
    %v706 = vld [vmem:[#allocation2 + $0x250] sm:$0xf]
    %v707 = vld [vmem:[#allocation2 + $0x258] sm:$0xf]
    %v708 = vld [vmem:[#allocation2 + $0x260] sm:$0xf]
    %v709 = vld [vmem:[#allocation2 + $0x268] sm:$0xf]
    %v710 = vld [vmem:[#allocation2 + $0x270] sm:$0xf]
    %v711 = vld [vmem:[#allocation2 + $0x278] sm:$0xf]
    %v712 = vld [vmem:[#allocation2 + $0x280] sm:$0xf]
    %v713 = vld [vmem:[#allocation2 + $0x288] sm:$0xf]
    %v714 = vld [vmem:[#allocation2 + $0x290] sm:$0xf]
    %v715 = vld [vmem:[#allocation2 + $0x298] sm:$0xf]
    %v716 = vld [vmem:[#allocation2 + $0x2a0] sm:$0xf]
    %v717 = vld [vmem:[#allocation2 + $0x2a8] sm:$0xf]
    %v718 = vld [vmem:[#allocation2 + $0x2b0] sm:$0xf]
    %v719 = vld [vmem:[#allocation2 + $0x2b8] sm:$0xf]
    %v720 = vld [vmem:[#allocation2 + $0x2c0] sm:$0xf]
    %v721 = vld [vmem:[#allocation2 + $0x2c8] sm:$0xf]
    %v722 = vld [vmem:[#allocation2 + $0x2d0] sm:$0xf]
    %v723 = vld [vmem:[#allocation2 + $0x2d8] sm:$0xf]
    %v724 = vld [vmem:[#allocation2 + $0x2e0] sm:$0xf]
    %v725 = vld [vmem:[#allocation2 + $0x2e8] sm:$0xf]
    %v726 = vld [vmem:[#allocation2 + $0x2f0] sm:$0xf]
    %v727 = vld [vmem:[#allocation2 + $0x2f8] sm:$0xf]
    %v728 = vld [vmem:[#allocation2 + $0x300] sm:$0xf]
    %v729 = vld [vmem:[#allocation2 + $0x308] sm:$0xf]
    %v730 = vld [vmem:[#allocation2 + $0x310] sm:$0xf]
    %v731 = vld [vmem:[#allocation2 + $0x318] sm:$0xf]
    %v732 = vld [vmem:[#allocation2 + $0x320] sm:$0xf]
    %v733 = vld [vmem:[#allocation2 + $0x328] sm:$0xf]
    %v734 = vld [vmem:[#allocation2 + $0x330] sm:$0xf]
    %v735 = vld [vmem:[#allocation2 + $0x338] sm:$0xf]
    %v736 = vld [vmem:[%s2 + $0x2] ss:$0 sm:$0xff]
    %v769 = vunpack.c.l.b16 %v704
    %v770 = vunpack.c.l.b16 %v705
    %v771 = vunpack.c.l.b16 %v706
    %v772 = vunpack.c.l.b16 %v707
    %v773 = vunpack.c.l.b16 %v708
    %v774 = vunpack.c.l.b16 %v709
    %v775 = vunpack.c.l.b16 %v710
    %v776 = vunpack.c.l.b16 %v711
    %v777 = vunpack.c.l.b16 %v712
    %v778 = vunpack.c.l.b16 %v713
    %v779 = vunpack.c.l.b16 %v714
    %v780 = vunpack.c.l.b16 %v715
    %v781 = vunpack.c.l.b16 %v716
    %v782 = vunpack.c.l.b16 %v717
    %v783 = vunpack.c.l.b16 %v718
    %v784 = vunpack.c.l.b16 %v719
    %v785 = vunpack.c.l.b16 %v720
    %v786 = vunpack.c.l.b16 %v721
    %v787 = vunpack.c.l.b16 %v722
    %v788 = vunpack.c.l.b16 %v723
    %v789 = vunpack.c.l.b16 %v724
    %v790 = vunpack.c.l.b16 %v725
    %v791 = vunpack.c.l.b16 %v726
    %v792 = vunpack.c.l.b16 %v727
    %v793 = vunpack.c.l.b16 %v728
    %v794 = vunpack.c.l.b16 %v729
    %v795 = vunpack.c.l.b16 %v730
    %v796 = vunpack.c.l.b16 %v731
    %v797 = vunpack.c.l.b16 %v732
    %v798 = vunpack.c.l.b16 %v733
    %v799 = vunpack.c.l.b16 %v734
    %v800 = vunpack.c.l.b16 %v735
    %v801 = vpack.c.b16 %v770, %v769
    %v802 = vpack.c.b16 %v772, %v771
    %v803 = vpack.c.b16 %v774, %v773
    %v804 = vpack.c.b16 %v776, %v775
    %v805 = vpack.c.b16 %v778, %v777
    %v806 = vpack.c.b16 %v780, %v779
    %v807 = vpack.c.b16 %v782, %v781
    %v808 = vpack.c.b16 %v784, %v783
    %v809 = vpack.c.b16 %v786, %v785
    %v810 = vpack.c.b16 %v788, %v787
    %v811 = vpack.c.b16 %v790, %v789
    %v812 = vpack.c.b16 %v792, %v791
    %v813 = vpack.c.b16 %v794, %v793
    %v814 = vpack.c.b16 %v796, %v795
    %v815 = vpack.c.b16 %v798, %v797
    %v816 = vpack.c.b16 %v800, %v799
    %833 = vmatprep.subr.bf16.mxu0 0
    %834 = vmatpush1.bf16.msra.mxu0 %v801
    %835 = vmatprep.subr.bf16.mxu0 0
    %836 = vmatpush1.bf16.msra.mxu0 %v802
    %837 = vmatprep.subr.bf16.mxu0 0
    %838 = vmatpush1.bf16.msra.mxu0 %v803
    %839 = vmatprep.subr.bf16.mxu0 0
    %840 = vmatpush1.bf16.msra.mxu0 %v804
    %841 = vmatprep.subr.bf16.mxu0 0
    %842 = vmatpush1.bf16.msra.mxu0 %v805
    %843 = vmatprep.subr.bf16.mxu0 0
    %844 = vmatpush1.bf16.msra.mxu0 %v806
    %845 = vmatprep.subr.bf16.mxu0 0
    %846 = vmatpush1.bf16.msra.mxu0 %v807
    %847 = vmatprep.subr.bf16.mxu0 0
    %848 = vmatpush1.bf16.msra.mxu0 %v808
    %849 = vmatprep.subr.bf16.mxu0 0
    %850 = vmatpush1.bf16.msra.mxu0 %v809
    %851 = vmatprep.subr.bf16.mxu0 0
    %852 = vmatpush1.bf16.msra.mxu0 %v810
    %853 = vmatprep.subr.bf16.mxu0 0
    %854 = vmatpush1.bf16.msra.mxu0 %v811
    %855 = vmatprep.subr.bf16.mxu0 0
    %856 = vmatpush1.bf16.msra.mxu0 %v812
    %857 = vmatprep.subr.bf16.mxu0 0
    %858 = vmatpush1.bf16.msra.mxu0 %v813
    %859 = vmatprep.subr.bf16.mxu0 0
    %860 = vmatpush1.bf16.msra.mxu0 %v814
    %861 = vmatprep.subr.bf16.mxu0 0
    %862 = vmatpush1.bf16.msra.mxu0 %v815
    %863 = vmatprep.subr.bf16.mxu0 0
    %864 = vmatpush1.bf16.msra.mxu0 %v816
    %865 = vmatprep.mubr.bf16.mxu0 %v703
    %866 = vmatmul.mubr.bf16.gmra.mrb[0].mxu0 %v702
    %v867 = vpop.f32.mrb[0].mxu0
    %v868 = vadd.f32 %v736, %v867
    %v869 = vpop.f32.mrb[0].mxu0
    %v870 = vpop.f32.mrb[0].mxu0
    %v871 = vadd.f32 %v736, %v870
    %v872 = vpop.f32.mrb[0].mxu0
    %873 = vdwg.mxu0
    %v874 = vmax.f32 %v868, 0.0
    %v875 = vmax.f32 %v871, 0.0
    %v876 = vpack.c.bf16 %v875, %v874
    %v877 = vld [vmem:[#allocation2 + $0x340] sm:$0xf]
    %v878 = vld [vmem:[#allocation2 + $0x348] sm:$0xf]
    %v879 = vld [vmem:[#allocation2 + $0x350] sm:$0xf]
    %v880 = vld [vmem:[#allocation2 + $0x358] sm:$0xf]
    %v881 = vld [vmem:[#allocation2 + $0x360] sm:$0xf]
    %v882 = vld [vmem:[#allocation2 + $0x368] sm:$0xf]
    %v883 = vld [vmem:[#allocation2 + $0x370] sm:$0xf]
    %v884 = vld [vmem:[#allocation2 + $0x378] sm:$0xf]
    %v885 = vld [vmem:[#allocation2 + $0x380] sm:$0xf]
    %v886 = vld [vmem:[#allocation2 + $0x388] sm:$0xf]
    %v887 = vld [vmem:[#allocation2 + $0x390] sm:$0xf]
    %v888 = vld [vmem:[#allocation2 + $0x398] sm:$0xf]
    %v889 = vld [vmem:[#allocation2 + $0x3a0] sm:$0xf]
    %v890 = vld [vmem:[#allocation2 + $0x3a8] sm:$0xf]
    %v891 = vld [vmem:[#allocation2 + $0x3b0] sm:$0xf]
    %v892 = vld [vmem:[#allocation2 + $0x3b8] sm:$0xf]
    %v893 = vld [vmem:[%s2 + $0x3] ss:$0 sm:$0xff]
    %v910 = vunpack.c.l.b16 %v877
    %v911 = vunpack.c.l.b16 %v878
    %v912 = vunpack.c.l.b16 %v879
    %v913 = vunpack.c.l.b16 %v880
    %v914 = vunpack.c.l.b16 %v881
    %v915 = vunpack.c.l.b16 %v882
    %v916 = vunpack.c.l.b16 %v883
    %v917 = vunpack.c.l.b16 %v884
    %v918 = vunpack.c.l.b16 %v885
    %v919 = vunpack.c.l.b16 %v886
    %v920 = vunpack.c.l.b16 %v887
    %v921 = vunpack.c.l.b16 %v888
    %v922 = vunpack.c.l.b16 %v889
    %v923 = vunpack.c.l.b16 %v890
    %v924 = vunpack.c.l.b16 %v891
    %v925 = vunpack.c.l.b16 %v892
    %v926 = vpack.c.b16 %v911, %v910
    %v927 = vpack.c.b16 %v913, %v912
    %v928 = vpack.c.b16 %v915, %v914
    %v929 = vpack.c.b16 %v917, %v916
    %v930 = vpack.c.b16 %v919, %v918
    %v931 = vpack.c.b16 %v921, %v920
    %v932 = vpack.c.b16 %v923, %v922
    %v933 = vpack.c.b16 %v925, %v924
    %942 = vmatprep.subr.bf16.mxu0 0
    %943 = vmatpush1.bf16.msra.mxu0 %v926
    %944 = vmatprep.subr.bf16.mxu0 0
    %945 = vmatpush1.bf16.msra.mxu0 %v927
    %946 = vmatprep.subr.bf16.mxu0 0
    %947 = vmatpush1.bf16.msra.mxu0 %v928
    %948 = vmatprep.subr.bf16.mxu0 0
    %949 = vmatpush1.bf16.msra.mxu0 %v929
    %950 = vmatprep.subr.bf16.mxu0 0
    %951 = vmatpush1.bf16.msra.mxu0 %v930
    %952 = vmatprep.subr.bf16.mxu0 0
    %953 = vmatpush1.bf16.msra.mxu0 %v931
    %954 = vmatprep.subr.bf16.mxu0 0
    %955 = vmatpush1.bf16.msra.mxu0 %v932
    %956 = vmatprep.subr.bf16.mxu0 0
    %957 = vmatpush1.bf16.msra.mxu0 %v933
    %958 = vmatprep.subr.bf16.mxu0 0
    %959 = vmatpush1.bf16.msra.mxu0 0
    %960 = vmatprep.subr.bf16.mxu0 0
    %961 = vmatpush1.bf16.msra.mxu0 0
    %962 = vmatprep.subr.bf16.mxu0 0
    %963 = vmatpush1.bf16.msra.mxu0 0
    %964 = vmatprep.subr.bf16.mxu0 0
    %965 = vmatpush1.bf16.msra.mxu0 0
    %966 = vmatprep.subr.bf16.mxu0 0
    %967 = vmatpush1.bf16.msra.mxu0 0
    %968 = vmatprep.subr.bf16.mxu0 0
    %969 = vmatpush1.bf16.msra.mxu0 0
    %970 = vmatprep.subr.bf16.mxu0 0
    %971 = vmatpush1.bf16.msra.mxu0 0
    %972 = vmatprep.subr.bf16.mxu0 0
    %973 = vmatpush1.bf16.msra.mxu0 0
    %974 = vmatprep.mubr.bf16.mxu0 0
    %975 = vmatmul.mubr.bf16.gmra.mrb[0].mxu0 %v876
    %v976 = vpop.f32.mrb[0].mxu0
    %v977 = vadd.f32 %v893, %v976
    %v978 = vpop.f32.mrb[0].mxu0
    %v979 = vpop.f32.mrb[0].mxu0
    %v980 = vadd.f32 %v893, %v979
    %v981 = vpop.f32.mrb[0].mxu0
    %982 = vdwg.mxu0
    %v983 = vmax.f32 %v977, 0.0
    %v984 = vmax.f32 %v980, 0.0
    %v985 = vpack.c.bf16 %v984, %v983
    %v986 = vld [vmem:[#allocation2 + $0x3c0] sm:$0xf]
    %v987 = vld [vmem:[#allocation2 + $0x3c8] sm:$0xf]
    %v988 = vld [vmem:[#allocation2 + $0x3d0] sm:$0xf]
    %v989 = vld [vmem:[#allocation2 + $0x3d8] sm:$0xf]
    %v990 = vld [vmem:[#allocation2 + $0x3e0] sm:$0xf]
    %v991 = vld [vmem:[#allocation2 + $0x3e8] sm:$0xf]
    %v992 = vld [vmem:[#allocation2 + $0x3f0] sm:$0xf]
    %v993 = vld [vmem:[#allocation2 + $0x3f8] sm:$0xf]
    %v994 = vld [vmem:[%s2 + $0x4] ss:$0 sm:$0xff]
    %v1003 = vunpack.c.l.b16 %v986
    %v1004 = vunpack.c.l.b16 %v987
    %v1005 = vunpack.c.l.b16 %v988
    %v1006 = vunpack.c.l.b16 %v989
    %v1007 = vunpack.c.l.b16 %v990
    %v1008 = vunpack.c.l.b16 %v991
    %v1009 = vunpack.c.l.b16 %v992
    %v1010 = vunpack.c.l.b16 %v993
    %v1011 = vpack.c.b16 %v1004, %v1003
    %v1012 = vpack.c.b16 %v1006, %v1005
    %v1013 = vpack.c.b16 %v1008, %v1007
    %v1014 = vpack.c.b16 %v1010, %v1009
    %vm1019 = vcmask 523264
    %v1021 = vsel %vm1019, %v985, 0
    %1023 = vmatprep.subr.bf16.mxu0 0
    %1024 = vmatpush1.bf16.msra.mxu0 %v1011
    %1025 = vmatprep.subr.bf16.mxu0 0
    %1026 = vmatpush1.bf16.msra.mxu0 %v1012
    %1027 = vmatprep.subr.bf16.mxu0 0
    %1028 = vmatpush1.bf16.msra.mxu0 %v1013
    %1029 = vmatprep.subr.bf16.mxu0 0
    %1030 = vmatpush1.bf16.msra.mxu0 %v1014
    %1031 = vmatprep.subr.bf16.mxu0 0
    %1032 = vmatpush1.bf16.msra.mxu0 0
    %1033 = vmatprep.subr.bf16.mxu0 0
    %1034 = vmatpush1.bf16.msra.mxu0 0
    %1035 = vmatprep.subr.bf16.mxu0 0
    %1036 = vmatpush1.bf16.msra.mxu0 0
    %1037 = vmatprep.subr.bf16.mxu0 0
    %1038 = vmatpush1.bf16.msra.mxu0 0
    %1039 = vmatprep.subr.bf16.mxu0 0
    %1040 = vmatpush1.bf16.msra.mxu0 0
    %1041 = vmatprep.subr.bf16.mxu0 0
    %1042 = vmatpush1.bf16.msra.mxu0 0
    %1043 = vmatprep.subr.bf16.mxu0 0
    %1044 = vmatpush1.bf16.msra.mxu0 0
    %1045 = vmatprep.subr.bf16.mxu0 0
    %1046 = vmatpush1.bf16.msra.mxu0 0
    %1047 = vmatprep.subr.bf16.mxu0 0
    %1048 = vmatpush1.bf16.msra.mxu0 0
    %1049 = vmatprep.subr.bf16.mxu0 0
    %1050 = vmatpush1.bf16.msra.mxu0 0
    %1051 = vmatprep.subr.bf16.mxu0 0
    %1052 = vmatpush1.bf16.msra.mxu0 0
    %1053 = vmatprep.subr.bf16.mxu0 0
    %1054 = vmatpush1.bf16.msra.mxu0 0
    %1055 = vmatprep.mubr.bf16.mxu0 0
    %1056 = vmatmul.mubr.bf16.gmra.mrb[0].mxu0 %v1021
    %v1057 = vpop.f32.mrb[0].mxu0
    %v1058 = vadd.f32 %v994, %v1057
    %v1059 = vpop.f32.mrb[0].mxu0
    %v1060 = vpop.f32.mrb[0].mxu0
    %v1061 = vadd.f32 %v994, %v1060
    %v1062 = vpop.f32.mrb[0].mxu0
    %1063 = vdwg.mxu0
    %v1064 = vmax.f32 %v1058, 0.0
    %v1065 = vmax.f32 %v1061, 0.0
    %v1066 = vld [vmem:[%s2 + $0x5] ss:$0 sm:$0xff]
    %v1067 = vld [vmem:[%s2 + $0x6] ss:$0 sm:$0xff]
    %v1068 = vmul.f32 %v1064, %v1066
    %v1069 = vmul.f32 %v1065, %v1066
    %v1070 = vsel %vm76, %v1068, 0.0
    %1071 = vadd.xlane.f32.xlu0 %v1070
    %v1072 = vpop.xlane.xlu0 %1071
    %v1073 = vsel %vm76, %v1069, 0.0
    %1074 = vadd.xlane.f32.xlu0 %v1073
    %v1075 = vpop.xlane.xlu0 %1074
    %v1076 = vadd.f32 %v1072, %v1067
    %v1077 = vadd.f32 %v1075, %v1067
    %v1078 = vand.u32 2147483647, %v1076
    %v1079 = vand.u32 2147483647, %v1077
    %1082 = vrot.lane.b32.xlu0 %v1078, 1
    %v1083 = vpop.permute.xlu0 %1082
    %1084 = vrot.lane.b32.xlu0 %v1079, 1
    %v1085 = vpop.permute.xlu0 %1084
    %vm1088 = vcmask 7168
    %v1089 = vsel %vm1088, %v1076, %v1083
    %v1090 = vsel %vm1088, %v1077, %v1085
    %vm1091 = vcmask 15360
    %v1092 = vsel %vm1091, %v1089, 0.0
    %v1093 = vrot.slane %v1092, 4
    %v1094 = vadd.f32 %v1092, %v1093
    %v1095 = vrot.slane %v1094, 2
    %v1096 = vadd.f32 %v1094, %v1095
    %v1097 = vrot.slane %v1096, 1
    %v1098 = vadd.f32 %v1096, %v1097
    %v1099 = vsel %vm1091, %v1090, 0.0
    %v1100 = vrot.slane %v1099, 4
    %v1101 = vadd.f32 %v1099, %v1100
    %v1102 = vrot.slane %v1101, 2
    %v1103 = vadd.f32 %v1101, %v1102
    %v1104 = vrot.slane %v1103, 1
    %v1105 = vadd.f32 %v1103, %v1104
    %vm1106 = vcmask 1040384
    %v1107 = vsel %vm1106, %v1098, %v1105
    %vm1108 = vcmask 9216
    %1109 = vst.msk [vmem:[%s3] sm:$0x3] %vm1108, %v1107
    // Predicated region
    $region18: #{net_forward.1} parent=1 // pred_check
      _
    $region19: #{net_forward.1} parent=1 // pred_check_branch
      %1111 = sbr.rel (0) target = $region21
    $region20: #{net_forward.1} parent=1 // pred_region
      _
    $region21: #{net_forward.1} parent=1 // pred_fallthru
      _
    // Predicated region
    $region22: #{net_forward.1} parent=1 // pred_check
      _
    $region23: #{net_forward.1} parent=1 // pred_check_branch
      %1113 = sbr.rel (0) target = $region25
    $region24: #{net_forward.1} parent=1 // pred_region
      _
    $region25: #{net_forward.1} parent=1 // pred_fallthru
      _
    %1114 = vsyncpa [#allocation3], 1

</llo_original>
